<compile_context>
chip_gen: v6e
topology: v6e:2x2x1
jax: 0.10.0
libtpu: 0.0.40
codegen_flags: <defaults>
</compile_context>

<pallas_src>
import jax
import jax.numpy as jnp
from jax.experimental import pallas as pl
from jax.experimental.pallas import tpu as pltpu

IN_FEATURES = 1280   # fc1 input dim  (nn.Linear(1280, 1))
OUT_FEATURES = 1     # fc1 output dim

# ~10 MiB per input block (double-buffered ~20 MiB) -> 2048 rows for f32,
# 4096 rows for bf16.  Long HBM bursts, per-step overhead well amortized.
TILE_BYTES = 10 * 1024 * 1024


def _round_up(n, m):
    return ((n + m - 1) // m) * m


def fc1_kernel(x_ref, w_ref, b_ref, o_ref):
    """y = sum(x * w, axis=-1) + b   (N=1 GEMV on the VPU/XLU, not the MXU)."""
    # x_ref: (tb, 1280) VMEM    w_ref: (1, 1280) VMEM (resident, same dtype as x)
    # b_ref: (1,)       SMEM    o_ref: (tb, 1)   VMEM
    prod = x_ref[...] * w_ref[...]                       # native-dtype multiply
    y = jnp.sum(prod, axis=-1, keepdims=True, dtype=jnp.float32)  # f32 accumulate
    o_ref[...] = (y + b_ref[0]).astype(o_ref.dtype)


def binary_classifier_head(x, weight, bias):
    """y = x @ weight.T + bias, matching torch.nn.Linear(1280, 1).

    x:      (B, 1280) float32 or bfloat16
    weight: (1, 1280)
    bias:   (1,)
    returns (B, 1) in x.dtype
    """
    B, F = x.shape
    assert F == IN_FEATURES
    assert weight.shape == (OUT_FEATURES, IN_FEATURES)
    assert bias.shape == (OUT_FEATURES,)

    itemsize = jnp.dtype(x.dtype).itemsize
    # Multiply in the activation dtype (bf16 stays bf16 on v6e/v7x VPUs);
    # accumulation is forced to f32 inside the kernel.
    weight = weight.astype(x.dtype)
    bias = bias.astype(jnp.float32)

    # Dtype-aware max rows per block (constant VMEM footprint), sublane-aligned.
    tb_max = max(8, (TILE_BYTES // (F * itemsize)) // 8 * 8)
    # Aim for >= 2 grid steps when the batch allows, so a v7x megacore can
    # shard the parallel batch axis across both TensorCores.
    tb = max(8, min(tb_max, _round_up(pl.cdiv(B, 2), 8)))
    num_tiles = pl.cdiv(B, tb)   # ragged last block handled by Pallas

    cost = pl.CostEstimate(
        flops=2 * B * F,
        transcendentals=0,
        bytes_accessed=B * F * itemsize + B * itemsize
        + F * itemsize + 4,
    )

    out = pl.pallas_call(
        fc1_kernel,
        out_shape=jax.ShapeDtypeStruct((B, OUT_FEATURES), x.dtype),
        grid_spec=pltpu.PrefetchScalarGridSpec(
            num_scalar_prefetch=0,
            grid=(num_tiles,),
            in_specs=[
                # x: tiled over batch -> double-buffered DMA per grid step.
                pl.BlockSpec((tb, F), lambda i: (i, 0)),
                # weight: constant index_map -> stays resident in VMEM,
                # no re-DMA of the small weight per step.
                pl.BlockSpec((OUT_FEATURES, F), lambda i: (0, 0)),
                # bias: whole (1,) array in SMEM, read on the scalar path.
                pl.BlockSpec(memory_space=pltpu.MemorySpace.SMEM),
            ],
            out_specs=pl.BlockSpec((tb, OUT_FEATURES), lambda i: (i, 0)),
        ),
        compiler_params=pltpu.CompilerParams(
            # Rows are independent -> allow megacore sharding on v7x
            # (harmless on single-TC v5e/v6e).
            dimension_semantics=("parallel",),
            # Two ~10 MiB input buffers + small weight/output; raise the
            # scoped limit so this also fits v5e's 16 MiB default.
            vmem_limit_bytes=32 * 1024 * 1024,
        ),
        cost_estimate=cost,
    )(x, weight, bias)

    return out


if __name__ == "__main__":
    key = jax.random.PRNGKey(0)
    k_x, k_w, k_b = jax.random.split(key, 3)

    # Small batch; x stands in for base_model(xyz, features) output (B, 1280).
    B = 8
    x = jax.random.normal(k_x, (B, IN_FEATURES), dtype=jnp.float32)

    # Deterministic fc1 parameters (nn.Linear(1280, 1) shapes / init bounds).
    bound = 1.0 / (IN_FEATURES ** 0.5)
    weight = jax.random.uniform(
        k_w, (OUT_FEATURES, IN_FEATURES), minval=-bound, maxval=bound,
        dtype=jnp.float32)
    bias = jax.random.uniform(
        k_b, (OUT_FEATURES,), minval=-bound, maxval=bound, dtype=jnp.float32)

    out = binary_classifier_head(x, weight, bias)
    out = jax.block_until_ready(out)

    # Reference check against plain JAX.
    ref = x @ weight.T + bias[None, :]
    assert out.shape == (B, OUT_FEATURES)
    assert jnp.allclose(out, ref, atol=1e-4, rtol=1e-4)

    print("KERNEL_OK")
</pallas_src>

<mosaic_0001>
module attributes {stable_mosaic.version = 11 : i64} {
  func.func @fc1_kernel(%arg0: i32, %arg1: memref<8x1280xf32, #tpu.memory_space<vmem>>, %arg2: memref<1x1280xf32, #tpu.memory_space<vmem>>, %arg3: memref<1xf32, #tpu.memory_space<smem>>, %arg4: memref<8x1xf32, #tpu.memory_space<vmem>>) attributes {dimension_semantics = [#tpu.dimension_semantics<parallel>], iteration_bounds = array<i64: 1>, scalar_prefetch = 0 : i64, scratch_operands = 0 : i64, tpu.core_type = #tpu.core_type<tc>, window_params = [{transform_indices = @transform_0, window_bounds = array<i64: 8, 1280>}, {pipeline_mode = #tpu.pipeline_mode<synchronous>, transform_indices = @transform_1, window_bounds = array<i64: 1, 1280>}, {transform_indices = @transform_2, window_bounds = array<i64: 1>}, {transform_indices = @transform_3, window_bounds = array<i64: 8, 1>}]} {
    %c0 = arith.constant 0 : index
    %c0_0 = arith.constant 0 : index
    %0 = vector.load %arg1[%c0, %c0_0] : memref<8x1280xf32, #tpu.memory_space<vmem>>, vector<8x1280xf32>
    %c0_1 = arith.constant 0 : index
    %c0_2 = arith.constant 0 : index
    %1 = vector.load %arg2[%c0_1, %c0_2] : memref<1x1280xf32, #tpu.memory_space<vmem>>, vector<1x1280xf32>
    %2 = vector.broadcast %1 : vector<1x1280xf32> to vector<8x1280xf32>
    %3 = arith.mulf %0, %2 : vector<8x1280xf32>
    %cst = arith.constant dense<0.000000e+00> : vector<8xf32>
    %4 = vector.multi_reduction <add>, %3, %cst [1] : vector<8x1280xf32> to vector<8xf32>
    %5 = vector.shape_cast %4 : vector<8xf32> to vector<8x1xf32>
    %c0_3 = arith.constant 0 : index
    %6 = memref.load %arg3[%c0_3] : memref<1xf32, #tpu.memory_space<smem>>
    %7 = vector.broadcast %6 : f32 to vector<8x1xf32>
    %8 = arith.addf %5, %7 : vector<8x1xf32>
    %c0_4 = arith.constant 0 : index
    %c0_5 = arith.constant 0 : index
    %9 = vector.load %arg4[%c0_4, %c0_5] : memref<8x1xf32, #tpu.memory_space<vmem>>, vector<8x1xf32>
    tpu.vector_store %arg4[%c0_4, %c0_5], %8 {strides = array<i32>} : memref<8x1xf32, #tpu.memory_space<vmem>>, vector<8x1xf32>,
    return
  }
  func.func @transform_0(%arg0: i32) -> (i32, i32) {
    %c0_i32 = arith.constant 0 : i32
    %c0_i32_0 = arith.constant 0 : i32
    return %arg0, %c0_i32 : i32, i32
  }
  func.func @transform_1(%arg0: i32) -> (i32, i32) {
    %c0_i32 = arith.constant 0 : i32
    %c0_i32_0 = arith.constant 0 : i32
    %c0_i32_1 = arith.constant 0 : i32
    return %c0_i32, %c0_i32_0 : i32, i32
  }
  func.func @transform_2(%arg0: i32) -> i32 {
    %c0_i32 = arith.constant 0 : i32
    %c0_i32_0 = arith.constant 0 : i32
    return %c0_i32 : i32
  }
  func.func @transform_3(%arg0: i32) -> (i32, i32) {
    %c0_i32 = arith.constant 0 : i32
    %c0_i32_0 = arith.constant 0 : i32
    return %arg0, %c0_i32 : i32, i32
  }
}

</mosaic_0001>

<llo_original>
// kernel: tpu_custom_call.1
$region0: #{tpu_custom_call.1}
  #allocation0 [shape = 'u32[]', space=smem, size = 0x4, offset = 0x4, fixed_abs, tag = 'smem constant byte address 0x4 - core index']
  #allocation1 [shape = 'u32[144,128]{1,0:T(1,128)}', space=vmem, size = 0x12000, scoped, tag = 'internal scratch']
  #allocation2 [shape = 'f32[1]{0:T(128)S(6)}', space=smem, size = 0x200, scoped, tag = 'scoped memory for tpu_custom_call.1']
  %s0 = inlined_call_operand.hbm [shape: f32[8,1280], index: 0, kind: input, shape index: {}]
  %s1 = inlined_call_operand.hbm [shape: f32[1,1280], index: 1, kind: input, shape index: {}]
  %s2 = inlined_call_operand.<no memory space> [shape: f32[1], index: 2, kind: input, shape index: {}]
  %s3 = inlined_call_operand.vmem [shape: f32[8,1], index: 3, kind: output, shape index: {}]
  %s4 = sld [smem:[#allocation0]]
  $region30: #{tpu_custom_call.1} parent=0
    _
  %s6 = ssub.s32 1, %s4
  %s7 = scalar_select 0, %s6, %s4
  %8 = sst [smem:[#allocation2]] %s2
  $region1: #{tpu_custom_call.1} parent=0
    #allocation3 [shape = 'u8[40960]{0}', space=vmem, size = 0xa000, scoped, tag = 'input window, operand 0, single buffered']
    #allocation4 [shape = 's32[1]{0}', space=sflag, size = 0x4, scoped, tag = 'scoped memory for tpu_custom_call.1']
    #allocation5 [shape = 'u8[5120]{0}', space=vmem, size = 0x1400, scoped, tag = 'input window, operand 1, single buffered']
    #allocation6 [shape = 's32[1]{0}', space=sflag, size = 0x4, scoped, tag = 'scoped memory for tpu_custom_call.1']
    %9 = vsyncpa [#allocation4], 0
    %10 = vsyncpa [#allocation6], 0
    // Predicated region
    $region2: #{tpu_custom_call.1} parent=1 // pred_check
      _
    $region3: #{tpu_custom_call.1} parent=1 // pred_check_branch
      %12 = sbr.rel (0) target = $region5
    $region4: #{tpu_custom_call.1} parent=1 // pred_region
      %s14 = ssub.s32 1280, 1280
      %15 = vsyncadd [#allocation4], %s14
      %s17 = sshll.u32 [#allocation3], 4
      %s18 = int_to_ptr.vmem [resolvable:$true] %s17
      %20 = dma.hbm_to_vmem [thread:$0]  %s0, 1280, %s18, [#allocation4]
    $region5: #{tpu_custom_call.1} parent=1 // pred_fallthru
      _
    // Predicated region
    $region6: #{tpu_custom_call.1} parent=1 // pred_check
      _
    $region7: #{tpu_custom_call.1} parent=1 // pred_check_branch
      %22 = sbr.rel (0) target = $region9
    $region8: #{tpu_custom_call.1} parent=1 // pred_region
      %s24 = ssub.s32 160, 160
      %25 = vsyncadd [#allocation6], %s24
      %s27 = sshll.u32 [#allocation5], 4
      %s28 = int_to_ptr.vmem [resolvable:$true] %s27
      %30 = dma.hbm_to_vmem [thread:$0]  %s1, 160, %s28, [#allocation6]
    $region9: #{tpu_custom_call.1} parent=1 // pred_fallthru
      _
    // Predicated region
    $region10: #{tpu_custom_call.1} parent=1 // pred_check
      _
    $region11: #{tpu_custom_call.1} parent=1 // pred_check_branch
      %32 = sbr.rel (0) target = $region13
    $region12: #{tpu_custom_call.1} parent=1 // pred_region
      _
    $region13: #{tpu_custom_call.1} parent=1 // pred_fallthru
      _
    // Predicated region
    $region14: #{tpu_custom_call.1} parent=1 // pred_check
      _
    $region15: #{tpu_custom_call.1} parent=1 // pred_check_branch
      %34 = sbr.rel (0) target = $region17
    $region16: #{tpu_custom_call.1} parent=1 // pred_region
      %35 = dma.done [#allocation4], 1280
    $region17: #{tpu_custom_call.1} parent=1 // pred_fallthru
      _
    // Predicated region
    $region18: #{tpu_custom_call.1} parent=1 // pred_check
      _
    $region19: #{tpu_custom_call.1} parent=1 // pred_check_branch
      %37 = sbr.rel (0) target = $region21
    $region20: #{tpu_custom_call.1} parent=1 // pred_region
      %38 = dma.done [#allocation6], 160
    $region21: #{tpu_custom_call.1} parent=1 // pred_fallthru
      _
    %v39 = vld [vmem:[#allocation3] sm:$0xff]
    %v40 = vld [vmem:[#allocation3 + $0x8] sm:$0xff]
    %v41 = vld [vmem:[#allocation3 + $0x10] sm:$0xff]
    %v42 = vld [vmem:[#allocation3 + $0x18] sm:$0xff]
    %v43 = vld [vmem:[#allocation3 + $0x20] sm:$0xff]
    %v44 = vld [vmem:[#allocation3 + $0x28] sm:$0xff]
    %v45 = vld [vmem:[#allocation3 + $0x30] sm:$0xff]
    %v46 = vld [vmem:[#allocation3 + $0x38] sm:$0xff]
    %v47 = vld [vmem:[#allocation3 + $0x40] sm:$0xff]
    %v48 = vld [vmem:[#allocation3 + $0x48] sm:$0xff]
    %v49 = vld [vmem:[#allocation5] sm:$0xff]
    %v50 = vld [vmem:[#allocation5 + $0x8] sm:$0x3]
    %v53 = vlaneseq
    %v54 = vshrl.u32 %v53, 7
    %v55 = vsub.s32 0, %v54
    %v56 = vrot.slane %v49, %v55
    %v57 = vlaneseq
    %v58 = vshrl.u32 %v57, 7
    %v59 = vsub.s32 1, %v58
    %v60 = vrot.slane %v49, %v59
    %v61 = vlaneseq
    %v62 = vshrl.u32 %v61, 7
    %v63 = vsub.s32 2, %v62
    %v64 = vrot.slane %v49, %v63
    %v65 = vlaneseq
    %v66 = vshrl.u32 %v65, 7
    %v67 = vsub.s32 3, %v66
    %v68 = vrot.slane %v49, %v67
    %v69 = vlaneseq
    %v70 = vshrl.u32 %v69, 7
    %v71 = vsub.s32 4, %v70
    %v72 = vrot.slane %v49, %v71
    %v73 = vlaneseq
    %v74 = vshrl.u32 %v73, 7
    %v75 = vsub.s32 5, %v74
    %v76 = vrot.slane %v49, %v75
    %v77 = vlaneseq
    %v78 = vshrl.u32 %v77, 7
    %v79 = vsub.s32 6, %v78
    %v80 = vrot.slane %v49, %v79
    %v81 = vlaneseq
    %v82 = vshrl.u32 %v81, 7
    %v83 = vsub.s32 7, %v82
    %v84 = vrot.slane %v49, %v83
    %v85 = vlaneseq
    %v86 = vshrl.u32 %v85, 7
    %v87 = vsub.s32 0, %v86
    %v88 = vrot.slane %v50, %v87
    %v89 = vlaneseq
    %v90 = vshrl.u32 %v89, 7
    %v91 = vsub.s32 1, %v90
    %v92 = vrot.slane %v50, %v91
    %v103 = vmul.f32 %v39, %v56
    %v104 = vmul.f32 %v40, %v60
    %v105 = vmul.f32 %v41, %v64
    %v106 = vmul.f32 %v42, %v68
    %v107 = vmul.f32 %v43, %v72
    %v108 = vmul.f32 %v44, %v76
    %v109 = vmul.f32 %v45, %v80
    %v110 = vmul.f32 %v46, %v84
    %v111 = vmul.f32 %v47, %v88
    %v112 = vmul.f32 %v48, %v92
    %v113 = vadd.f32 %v103, %v104
    %v114 = vadd.f32 %v113, %v105
    %v115 = vadd.f32 %v114, %v106
    %v116 = vadd.f32 %v115, %v107
    %v117 = vadd.f32 %v116, %v108
    %v118 = vadd.f32 %v117, %v109
    %v119 = vadd.f32 %v118, %v110
    %v120 = vadd.f32 %v119, %v111
    %v121 = vadd.f32 %v120, %v112
    %122 = vadd.xlane.f32.xlu0 %v121
    %v123 = vpop.xlane.xlu0 %122
    %s124 = sld [smem:[#allocation2]]
    %v125 = vstv %s124
    %v126 = vadd.f32 %v123, %v125
    %vm127 = vcmask 7168
    %128 = vst.msk [vmem:[%s3] sm:$0xff] %vm127, %v126
    // Predicated region
    $region22: #{tpu_custom_call.1} parent=1 // pred_check
      _
    $region23: #{tpu_custom_call.1} parent=1 // pred_check_branch
      %130 = sbr.rel (0) target = $region25
    $region24: #{tpu_custom_call.1} parent=1 // pred_region
      _
    $region25: #{tpu_custom_call.1} parent=1 // pred_fallthru
      _
    // Predicated region
    $region26: #{tpu_custom_call.1} parent=1 // pred_check
      _
    $region27: #{tpu_custom_call.1} parent=1 // pred_check_branch
      %132 = sbr.rel (0) target = $region29
    $region28: #{tpu_custom_call.1} parent=1 // pred_region
      _
    $region29: #{tpu_custom_call.1} parent=1 // pred_fallthru
      _
    %133 = vsyncpa [#allocation4], 1
    %134 = vsyncpa [#allocation6], 1

</llo_original>
